<compile_context>
chip_gen: v5e
topology: v5e:2x2
jax: 0.10.0
libtpu: 0.0.40
codegen_flags: <defaults>
</compile_context>

<pallas_src>
import numpy as np
import jax
import jax.numpy as jnp
from jax.experimental import pallas as pl
from jax.experimental.pallas import tpu as pltpu


# ---------------------------------------------------------------------------
# B-independent constants (built once at import).
# ---------------------------------------------------------------------------
_POOL_OFFS = ((0, 0), (0, 1), (1, 0), (1, 1))
_N_ALIGN = 128  # lane-dense output width


def _conv1_lut():
    """L1[in_idx, out_idx] -> flat index into concat(W1.reshape(100), [0]).

    in_idx  = ih*4 + iw                 (input pixel of the 4x4, 1 channel)
    out_idx = h*16 + w*4 + c            (output pixel h,w and out-channel c)
    """
    L = np.full((16, 64), 4 * 25, np.int32)  # sentinel -> zero
    for h in range(4):
        for w in range(4):
            for c in range(4):
                out_idx = h * 16 + w * 4 + c
                for ih in range(4):
                    for iw in range(4):
                        kh, kw = ih - h + 2, iw - w + 2
                        if 0 <= kh < 5 and 0 <= kw < 5:
                            L[ih * 4 + iw, out_idx] = c * 25 + kh * 5 + kw
    return L


def _conv2_lut():
    """L2[in_idx, out_idx] -> flat index into concat(W2.reshape(800), [0]).

    in_idx  = ih*8 + iw*4 + ic          (pooled1 layout: 2x2 spatial, 4 ch)
    out_idx = oh*16 + ow*8 + oc         (conv2 output: 2x2 spatial, 8 ch)
    """
    L = np.full((16, 32), 8 * 4 * 25, np.int32)
    for oh in range(2):
        for ow in range(2):
            for oc in range(8):
                out_idx = oh * 16 + ow * 8 + oc
                for ih in range(2):
                    for iw in range(2):
                        kh, kw = ih - oh + 2, iw - ow + 2  # always in [1,3]
                        for ic in range(4):
                            L[ih * 8 + iw * 4 + ic, out_idx] = (
                                oc * 100 + ic * 25 + kh * 5 + kw)
    return L


def _pool1_selectors():
    """(4, 64, 16) one-hot: h1 layout [h,w,c] (4x4x4) -> pooled [oh,ow,c]."""
    P = np.zeros((4, 64, 16), np.float32)
    for m, (di, dj) in enumerate(_POOL_OFFS):
        for oh in range(2):
            for ow in range(2):
                for c in range(4):
                    P[m, (2 * oh + di) * 16 + (2 * ow + dj) * 4 + c,
                      oh * 8 + ow * 4 + c] = 1.0
    return P


def _pool2_selectors():
    """(4, 32, 8) one-hot: h2 layout [oh,ow,oc] (2x2x8) -> pooled [oc]."""
    P = np.zeros((4, 32, 8), np.float32)
    for m, (di, dj) in enumerate(_POOL_OFFS):
        for oc in range(8):
            P[m, di * 16 + dj * 8 + oc, oc] = 1.0
    return P


_L1 = jnp.asarray(_conv1_lut())
_L2 = jnp.asarray(_conv2_lut())
_P1 = jnp.asarray(_pool1_selectors())
_P2 = jnp.asarray(_pool2_selectors())


# ---------------------------------------------------------------------------
# Pallas kernel: whole forward pass for one batch tile.
# ---------------------------------------------------------------------------
def cnn_kernel(x_ref,    # (TB, 16)   flattened 4x4 input, rows = batch
               a1_ref,   # (16, 64)   conv1 as a dense linear map
               b1_ref,   # (1, 64)
               p1_ref,   # (4, 64, 16) maxpool-1 one-hot selectors
               a2_ref,   # (16, 32)   conv2 as a dense linear map
               b2_ref,   # (1, 32)
               p2_ref,   # (4, 32, 8)  maxpool-2 one-hot selectors
               w3_ref,   # (8, 20)
               b3_ref,   # (1, 20)
               w4_ref,   # (20, 128)  padded to 128 lanes
               b4_ref,   # (1, 128)
               out_ref): # (TB, 128)
    f32 = jnp.float32

    # conv1 (single matmul) + bias + ReLU.  (TB, 64), layout [h, w, c]
    h1 = jnp.dot(x_ref[...], a1_ref[...], preferred_element_type=f32) + b1_ref[...]
    h1 = jnp.maximum(h1, 0.0)

    # maxpool 2x2: elementwise max over 4 tiny one-hot selections. (TB, 16)
    pooled1 = jnp.dot(h1, p1_ref[0], preferred_element_type=f32)
    for m in range(1, 4):
        pooled1 = jnp.maximum(
            pooled1, jnp.dot(h1, p1_ref[m], preferred_element_type=f32))

    # conv2 (single matmul) + bias + ReLU.  (TB, 32), layout [oh, ow, oc]
    h2 = jnp.dot(pooled1, a2_ref[...], preferred_element_type=f32) + b2_ref[...]
    h2 = jnp.maximum(h2, 0.0)

    # maxpool 2x2 -> one pixel.  (TB, 8) == flatten of NCHW (TB, 8, 1, 1)
    pooled2 = jnp.dot(h2, p2_ref[0], preferred_element_type=f32)
    for m in range(1, 4):
        pooled2 = jnp.maximum(
            pooled2, jnp.dot(h2, p2_ref[m], preferred_element_type=f32))

    # fc1 + ReLU, then output layer (lane-padded to 128).
    h3 = jnp.dot(pooled2, w3_ref[...], preferred_element_type=f32) + b3_ref[...]
    h3 = jnp.maximum(h3, 0.0)                                      # (TB, 20)
    out_ref[...] = (jnp.dot(h3, w4_ref[...], preferred_element_type=f32)
                    + b4_ref[...])                                 # (TB, 128)


# ---------------------------------------------------------------------------
# Host-side prep (call once per weight update — pure jnp, jit-friendly).
# ---------------------------------------------------------------------------
def prepare_params(params, n_actions):
    W1, b1, W2, b2, W3, b3, W4, b4 = params
    f32 = jnp.float32

    w1_ext = jnp.concatenate([W1.astype(f32).reshape(-1), jnp.zeros((1,), f32)])
    A1 = w1_ext[_L1]                                   # (16, 64)
    w2_ext = jnp.concatenate([W2.astype(f32).reshape(-1), jnp.zeros((1,), f32)])
    A2 = w2_ext[_L2]                                   # (16, 32)

    b1b = jnp.tile(b1.astype(f32), 16)[None, :]        # (1, 64)  (lane%4 == c)
    b2b = jnp.tile(b2.astype(f32), 4)[None, :]         # (1, 32)  (lane%8 == oc)

    W4p = jnp.zeros((20, _N_ALIGN), f32).at[:, :n_actions].set(W4.astype(f32))
    b4p = jnp.zeros((1, _N_ALIGN), f32).at[0, :n_actions].set(b4.astype(f32))

    return (A1, b1b, _P1, A2, b2b, _P2,
            W3.astype(f32), b3.astype(f32)[None, :], W4p, b4p)


def cnn_forward(x, prepped, n_actions):
    A1, b1b, P1, A2, b2b, P2, W3, b3, W4p, b4p = prepped
    B = x.shape[0]
    x_flat = x.reshape(B, 16).astype(jnp.float32)      # NCHW (B,1,4,4) -> (B,16)

    # Batch tiling: sublane-align to 8, tile up to 512 rows per grid step.
    B8 = ((B + 7) // 8) * 8
    TB = min(512, B8)
    Bp = ((B8 + TB - 1) // TB) * TB
    if Bp != B:
        x_flat = jnp.pad(x_flat, ((0, Bp - B), (0, 0)))

    row = lambda i: (i, 0)
    c2 = lambda i: (0, 0)
    c3 = lambda i: (0, 0, 0)

    out_pad = pl.pallas_call(
        cnn_kernel,
        out_shape=jax.ShapeDtypeStruct((Bp, _N_ALIGN), jnp.float32),
        grid=(Bp // TB,),
        in_specs=[
            pl.BlockSpec((TB, 16), row),        # x (tiled over batch)
            pl.BlockSpec(A1.shape, c2),         # weights resident across steps
            pl.BlockSpec(b1b.shape, c2),
            pl.BlockSpec(P1.shape, c3),
            pl.BlockSpec(A2.shape, c2),
            pl.BlockSpec(b2b.shape, c2),
            pl.BlockSpec(P2.shape, c3),
            pl.BlockSpec(W3.shape, c2),
            pl.BlockSpec(b3.shape, c2),
            pl.BlockSpec(W4p.shape, c2),
            pl.BlockSpec(b4p.shape, c2),
        ],
        out_specs=pl.BlockSpec((TB, _N_ALIGN), row),
        compiler_params=pltpu.CompilerParams(
            dimension_semantics=("parallel",)),
    )(x_flat, A1, b1b, P1, A2, b2b, P2, W3, b3, W4p, b4p)

    return out_pad[:B, :n_actions]


# ---------------------------------------------------------------------------
# Pure-JAX reference (correctness sanity check).
# ---------------------------------------------------------------------------
def reference_forward(x, params):
    W1, b1, W2, b2, W3, b3, W4, b4 = params
    dn1 = jax.lax.conv_dimension_numbers(x.shape, W1.shape,
                                         ('NCHW', 'OIHW', 'NCHW'))
    h = jax.lax.conv_general_dilated(x, W1, (1, 1), [(2, 2), (2, 2)],
                                     dimension_numbers=dn1)
    h = jax.nn.relu(h + b1[None, :, None, None])
    h = jax.lax.reduce_window(h, -jnp.inf, jax.lax.max,
                              (1, 1, 2, 2), (1, 1, 2, 2), 'VALID')
    dn2 = jax.lax.conv_dimension_numbers(h.shape, W2.shape,
                                         ('NCHW', 'OIHW', 'NCHW'))
    h = jax.lax.conv_general_dilated(h, W2, (1, 1), [(2, 2), (2, 2)],
                                     dimension_numbers=dn2)
    h = jax.nn.relu(h + b2[None, :, None, None])
    h = jax.lax.reduce_window(h, -jnp.inf, jax.lax.max,
                              (1, 1, 2, 2), (1, 1, 2, 2), 'VALID')
    h = h.reshape(h.shape[0], -1)
    h = jax.nn.relu(h @ W3 + b3)
    return h @ W4 + b4


if __name__ == "__main__":
    n_actions = 4
    B = 2
    key = jax.random.PRNGKey(0)
    ks = jax.random.split(key, 9)
    # Deterministic synthetic parameters (shapes from the module's __init__).
    W1 = 0.1 * jax.random.normal(ks[0], (4, 1, 5, 5), jnp.float32)     # conv1
    b1 = 0.1 * jax.random.normal(ks[1], (4,), jnp.float32)
    W2 = 0.1 * jax.random.normal(ks[2], (8, 4, 5, 5), jnp.float32)     # conv2
    b2 = 0.1 * jax.random.normal(ks[3], (8,), jnp.float32)
    W3 = 0.1 * jax.random.normal(ks[4], (8, 20), jnp.float32)          # fc1 (W.T)
    b3 = 0.1 * jax.random.normal(ks[5], (20,), jnp.float32)
    W4 = 0.1 * jax.random.normal(ks[6], (20, n_actions), jnp.float32)  # out (W.T)
    b4 = 0.1 * jax.random.normal(ks[7], (n_actions,), jnp.float32)
    params = (W1, b1, W2, b2, W3, b3, W4, b4)

    x = jax.random.normal(ks[8], (B, 1, 4, 4), jnp.float32)            # NCHW input

    prepped = prepare_params(params, n_actions)   # once per weight update
    out = cnn_forward(x, prepped, n_actions)
    out = jax.block_until_ready(out)

    ref = reference_forward(x, params)
    np.testing.assert_allclose(np.asarray(out), np.asarray(ref),
                               rtol=1e-5, atol=1e-5)
    print("KERNEL_OK")
</pallas_src>

<mosaic_0001>
module attributes {stable_mosaic.version = 11 : i64} {
  func.func @cnn_kernel(%arg0: i32, %arg1: memref<8x16xf32, #tpu.memory_space<vmem>>, %arg2: memref<16x64xf32, #tpu.memory_space<vmem>>, %arg3: memref<1x64xf32, #tpu.memory_space<vmem>>, %arg4: memref<4x64x16xf32, #tpu.memory_space<vmem>>, %arg5: memref<16x32xf32, #tpu.memory_space<vmem>>, %arg6: memref<1x32xf32, #tpu.memory_space<vmem>>, %arg7: memref<4x32x8xf32, #tpu.memory_space<vmem>>, %arg8: memref<8x20xf32, #tpu.memory_space<vmem>>, %arg9: memref<1x20xf32, #tpu.memory_space<vmem>>, %arg10: memref<20x128xf32, #tpu.memory_space<vmem>>, %arg11: memref<1x128xf32, #tpu.memory_space<vmem>>, %arg12: memref<8x128xf32, #tpu.memory_space<vmem>>) attributes {dimension_semantics = [#tpu.dimension_semantics<parallel>], iteration_bounds = array<i64: 1>, scalar_prefetch = 0 : i64, scratch_operands = 0 : i64, tpu.core_type = #tpu.core_type<tc>, window_params = [{transform_indices = @transform_0, window_bounds = array<i64: 8, 16>}, {pipeline_mode = #tpu.pipeline_mode<synchronous>, transform_indices = @transform_1, window_bounds = array<i64: 16, 64>}, {pipeline_mode = #tpu.pipeline_mode<synchronous>, transform_indices = @transform_2, window_bounds = array<i64: 1, 64>}, {pipeline_mode = #tpu.pipeline_mode<synchronous>, transform_indices = @transform_3, window_bounds = array<i64: 4, 64, 16>}, {pipeline_mode = #tpu.pipeline_mode<synchronous>, transform_indices = @transform_4, window_bounds = array<i64: 16, 32>}, {pipeline_mode = #tpu.pipeline_mode<synchronous>, transform_indices = @transform_5, window_bounds = array<i64: 1, 32>}, {pipeline_mode = #tpu.pipeline_mode<synchronous>, transform_indices = @transform_6, window_bounds = array<i64: 4, 32, 8>}, {pipeline_mode = #tpu.pipeline_mode<synchronous>, transform_indices = @transform_7, window_bounds = array<i64: 8, 20>}, {pipeline_mode = #tpu.pipeline_mode<synchronous>, transform_indices = @transform_8, window_bounds = array<i64: 1, 20>}, {pipeline_mode = #tpu.pipeline_mode<synchronous>, transform_indices = @transform_9, window_bounds = array<i64: 20, 128>}, {pipeline_mode = #tpu.pipeline_mode<synchronous>, transform_indices = @transform_10, window_bounds = array<i64: 1, 128>}, {transform_indices = @transform_11, window_bounds = array<i64: 8, 128>}]} {
    %c0 = arith.constant 0 : index
    %c0_0 = arith.constant 0 : index
    %0 = vector.load %arg1[%c0, %c0_0] : memref<8x16xf32, #tpu.memory_space<vmem>>, vector<8x16xf32>
    %c0_1 = arith.constant 0 : index
    %c0_2 = arith.constant 0 : index
    %1 = vector.load %arg2[%c0_1, %c0_2] : memref<16x64xf32, #tpu.memory_space<vmem>>, vector<16x64xf32>
    %cst = arith.constant dense<0.000000e+00> : vector<8x64xf32>
    %2 = tpu.matmul %0, %1, %cst {dimension_numbers = #tpu.dot_dimension_numbers<[1], [0], [0], [1], [0, 0, 1, 1], [], []>} : vector<8x16xf32>, vector<16x64xf32>, vector<8x64xf32> -> vector<8x64xf32>
    %c0_3 = arith.constant 0 : index
    %c0_4 = arith.constant 0 : index
    %3 = vector.load %arg3[%c0_3, %c0_4] : memref<1x64xf32, #tpu.memory_space<vmem>>, vector<1x64xf32>
    %4 = vector.broadcast %3 : vector<1x64xf32> to vector<8x64xf32>
    %5 = arith.addf %2, %4 : vector<8x64xf32>
    %cst_5 = arith.constant 0.000000e+00 : f32
    %6 = vector.broadcast %cst_5 : f32 to vector<8x64xf32>
    %7 = arith.maximumf %5, %6 : vector<8x64xf32>
    %c0_6 = arith.constant 0 : index
    %c0_7 = arith.constant 0 : index
    %c0_8 = arith.constant 0 : index
    %8 = vector.load %arg4[%c0_6, %c0_7, %c0_8] : memref<4x64x16xf32, #tpu.memory_space<vmem>>, vector<1x64x16xf32>
    %9 = vector.shape_cast %8 : vector<1x64x16xf32> to vector<64x16xf32>
    %cst_9 = arith.constant dense<0.000000e+00> : vector<8x16xf32>
    %10 = tpu.matmul %7, %9, %cst_9 {dimension_numbers = #tpu.dot_dimension_numbers<[1], [0], [0], [1], [0, 0, 1, 1], [], []>} : vector<8x64xf32>, vector<64x16xf32>, vector<8x16xf32> -> vector<8x16xf32>
    %c1 = arith.constant 1 : index
    %c0_10 = arith.constant 0 : index
    %c0_11 = arith.constant 0 : index
    %11 = vector.load %arg4[%c1, %c0_10, %c0_11] : memref<4x64x16xf32, #tpu.memory_space<vmem>>, vector<1x64x16xf32>
    %12 = vector.shape_cast %11 : vector<1x64x16xf32> to vector<64x16xf32>
    %cst_12 = arith.constant dense<0.000000e+00> : vector<8x16xf32>
    %13 = tpu.matmul %7, %12, %cst_12 {dimension_numbers = #tpu.dot_dimension_numbers<[1], [0], [0], [1], [0, 0, 1, 1], [], []>} : vector<8x64xf32>, vector<64x16xf32>, vector<8x16xf32> -> vector<8x16xf32>
    %14 = arith.maximumf %10, %13 : vector<8x16xf32>
    %c2 = arith.constant 2 : index
    %c0_13 = arith.constant 0 : index
    %c0_14 = arith.constant 0 : index
    %15 = vector.load %arg4[%c2, %c0_13, %c0_14] : memref<4x64x16xf32, #tpu.memory_space<vmem>>, vector<1x64x16xf32>
    %16 = vector.shape_cast %15 : vector<1x64x16xf32> to vector<64x16xf32>
    %cst_15 = arith.constant dense<0.000000e+00> : vector<8x16xf32>
    %17 = tpu.matmul %7, %16, %cst_15 {dimension_numbers = #tpu.dot_dimension_numbers<[1], [0], [0], [1], [0, 0, 1, 1], [], []>} : vector<8x64xf32>, vector<64x16xf32>, vector<8x16xf32> -> vector<8x16xf32>
    %18 = arith.maximumf %14, %17 : vector<8x16xf32>
    %c3 = arith.constant 3 : index
    %c0_16 = arith.constant 0 : index
    %c0_17 = arith.constant 0 : index
    %19 = vector.load %arg4[%c3, %c0_16, %c0_17] : memref<4x64x16xf32, #tpu.memory_space<vmem>>, vector<1x64x16xf32>
    %20 = vector.shape_cast %19 : vector<1x64x16xf32> to vector<64x16xf32>
    %cst_18 = arith.constant dense<0.000000e+00> : vector<8x16xf32>
    %21 = tpu.matmul %7, %20, %cst_18 {dimension_numbers = #tpu.dot_dimension_numbers<[1], [0], [0], [1], [0, 0, 1, 1], [], []>} : vector<8x64xf32>, vector<64x16xf32>, vector<8x16xf32> -> vector<8x16xf32>
    %22 = arith.maximumf %18, %21 : vector<8x16xf32>
    %c0_19 = arith.constant 0 : index
    %c0_20 = arith.constant 0 : index
    %23 = vector.load %arg5[%c0_19, %c0_20] : memref<16x32xf32, #tpu.memory_space<vmem>>, vector<16x32xf32>
    %cst_21 = arith.constant dense<0.000000e+00> : vector<8x32xf32>
    %24 = tpu.matmul %22, %23, %cst_21 {dimension_numbers = #tpu.dot_dimension_numbers<[1], [0], [0], [1], [0, 0, 1, 1], [], []>} : vector<8x16xf32>, vector<16x32xf32>, vector<8x32xf32> -> vector<8x32xf32>
    %c0_22 = arith.constant 0 : index
    %c0_23 = arith.constant 0 : index
    %25 = vector.load %arg6[%c0_22, %c0_23] : memref<1x32xf32, #tpu.memory_space<vmem>>, vector<1x32xf32>
    %26 = vector.broadcast %25 : vector<1x32xf32> to vector<8x32xf32>
    %27 = arith.addf %24, %26 : vector<8x32xf32>
    %cst_24 = arith.constant 0.000000e+00 : f32
    %28 = vector.broadcast %cst_24 : f32 to vector<8x32xf32>
    %29 = arith.maximumf %27, %28 : vector<8x32xf32>
    %c0_25 = arith.constant 0 : index
    %c0_26 = arith.constant 0 : index
    %c0_27 = arith.constant 0 : index
    %30 = vector.load %arg7[%c0_25, %c0_26, %c0_27] : memref<4x32x8xf32, #tpu.memory_space<vmem>>, vector<1x32x8xf32>
    %31 = vector.shape_cast %30 : vector<1x32x8xf32> to vector<32x8xf32>
    %cst_28 = arith.constant dense<0.000000e+00> : vector<8x8xf32>
    %32 = tpu.matmul %29, %31, %cst_28 {dimension_numbers = #tpu.dot_dimension_numbers<[1], [0], [0], [1], [0, 0, 1, 1], [], []>} : vector<8x32xf32>, vector<32x8xf32>, vector<8x8xf32> -> vector<8x8xf32>
    %c1_29 = arith.constant 1 : index
    %c0_30 = arith.constant 0 : index
    %c0_31 = arith.constant 0 : index
    %33 = vector.load %arg7[%c1_29, %c0_30, %c0_31] : memref<4x32x8xf32, #tpu.memory_space<vmem>>, vector<1x32x8xf32>
    %34 = vector.shape_cast %33 : vector<1x32x8xf32> to vector<32x8xf32>
    %cst_32 = arith.constant dense<0.000000e+00> : vector<8x8xf32>
    %35 = tpu.matmul %29, %34, %cst_32 {dimension_numbers = #tpu.dot_dimension_numbers<[1], [0], [0], [1], [0, 0, 1, 1], [], []>} : vector<8x32xf32>, vector<32x8xf32>, vector<8x8xf32> -> vector<8x8xf32>
    %36 = arith.maximumf %32, %35 : vector<8x8xf32>
    %c2_33 = arith.constant 2 : index
    %c0_34 = arith.constant 0 : index
    %c0_35 = arith.constant 0 : index
    %37 = vector.load %arg7[%c2_33, %c0_34, %c0_35] : memref<4x32x8xf32, #tpu.memory_space<vmem>>, vector<1x32x8xf32>
    %38 = vector.shape_cast %37 : vector<1x32x8xf32> to vector<32x8xf32>
    %cst_36 = arith.constant dense<0.000000e+00> : vector<8x8xf32>
    %39 = tpu.matmul %29, %38, %cst_36 {dimension_numbers = #tpu.dot_dimension_numbers<[1], [0], [0], [1], [0, 0, 1, 1], [], []>} : vector<8x32xf32>, vector<32x8xf32>, vector<8x8xf32> -> vector<8x8xf32>
    %40 = arith.maximumf %36, %39 : vector<8x8xf32>
    %c3_37 = arith.constant 3 : index
    %c0_38 = arith.constant 0 : index
    %c0_39 = arith.constant 0 : index
    %41 = vector.load %arg7[%c3_37, %c0_38, %c0_39] : memref<4x32x8xf32, #tpu.memory_space<vmem>>, vector<1x32x8xf32>
    %42 = vector.shape_cast %41 : vector<1x32x8xf32> to vector<32x8xf32>
    %cst_40 = arith.constant dense<0.000000e+00> : vector<8x8xf32>
    %43 = tpu.matmul %29, %42, %cst_40 {dimension_numbers = #tpu.dot_dimension_numbers<[1], [0], [0], [1], [0, 0, 1, 1], [], []>} : vector<8x32xf32>, vector<32x8xf32>, vector<8x8xf32> -> vector<8x8xf32>
    %44 = arith.maximumf %40, %43 : vector<8x8xf32>
    %c0_41 = arith.constant 0 : index
    %c0_42 = arith.constant 0 : index
    %45 = vector.load %arg8[%c0_41, %c0_42] : memref<8x20xf32, #tpu.memory_space<vmem>>, vector<8x20xf32>
    %cst_43 = arith.constant dense<0.000000e+00> : vector<8x20xf32>
    %46 = tpu.matmul %44, %45, %cst_43 {dimension_numbers = #tpu.dot_dimension_numbers<[1], [0], [0], [1], [0, 0, 1, 1], [], []>} : vector<8x8xf32>, vector<8x20xf32>, vector<8x20xf32> -> vector<8x20xf32>
    %c0_44 = arith.constant 0 : index
    %c0_45 = arith.constant 0 : index
    %47 = vector.load %arg9[%c0_44, %c0_45] : memref<1x20xf32, #tpu.memory_space<vmem>>, vector<1x20xf32>
    %48 = vector.broadcast %47 : vector<1x20xf32> to vector<8x20xf32>
    %49 = arith.addf %46, %48 : vector<8x20xf32>
    %cst_46 = arith.constant 0.000000e+00 : f32
    %50 = vector.broadcast %cst_46 : f32 to vector<8x20xf32>
    %51 = arith.maximumf %49, %50 : vector<8x20xf32>
    %c0_47 = arith.constant 0 : index
    %c0_48 = arith.constant 0 : index
    %52 = vector.load %arg10[%c0_47, %c0_48] : memref<20x128xf32, #tpu.memory_space<vmem>>, vector<20x128xf32>
    %cst_49 = arith.constant dense<0.000000e+00> : vector<8x128xf32>
    %53 = tpu.matmul %51, %52, %cst_49 {dimension_numbers = #tpu.dot_dimension_numbers<[1], [0], [0], [1], [0, 0, 1, 1], [], []>} : vector<8x20xf32>, vector<20x128xf32>, vector<8x128xf32> -> vector<8x128xf32>
    %c0_50 = arith.constant 0 : index
    %c0_51 = arith.constant 0 : index
    %54 = vector.load %arg11[%c0_50, %c0_51] : memref<1x128xf32, #tpu.memory_space<vmem>>, vector<1x128xf32>
    %55 = vector.broadcast %54 : vector<1x128xf32> to vector<8x128xf32>
    %56 = arith.addf %53, %55 : vector<8x128xf32>
    %c0_52 = arith.constant 0 : index
    %c0_53 = arith.constant 0 : index
    %57 = vector.load %arg12[%c0_52, %c0_53] : memref<8x128xf32, #tpu.memory_space<vmem>>, vector<8x128xf32>
    tpu.vector_store %arg12[%c0_52, %c0_53], %56 {strides = array<i32>} : memref<8x128xf32, #tpu.memory_space<vmem>>, vector<8x128xf32>,
    return
  }
  func.func @transform_0(%arg0: i32) -> (i32, i32) {
    %c0_i32 = arith.constant 0 : i32
    %c0_i32_0 = arith.constant 0 : i32
    return %arg0, %c0_i32 : i32, i32
  }
  func.func @transform_1(%arg0: i32) -> (i32, i32) {
    %c0_i32 = arith.constant 0 : i32
    %c0_i32_0 = arith.constant 0 : i32
    %c0_i32_1 = arith.constant 0 : i32
    return %c0_i32, %c0_i32_0 : i32, i32
  }
  func.func @transform_2(%arg0: i32) -> (i32, i32) {
    %c0_i32 = arith.constant 0 : i32
    %c0_i32_0 = arith.constant 0 : i32
    %c0_i32_1 = arith.constant 0 : i32
    return %c0_i32, %c0_i32_0 : i32, i32
  }
  func.func @transform_3(%arg0: i32) -> (i32, i32, i32) {
    %c0_i32 = arith.constant 0 : i32
    %c0_i32_0 = arith.constant 0 : i32
    %c0_i32_1 = arith.constant 0 : i32
    %c0_i32_2 = arith.constant 0 : i32
    return %c0_i32, %c0_i32_0, %c0_i32_1 : i32, i32, i32
  }
  func.func @transform_4(%arg0: i32) -> (i32, i32) {
    %c0_i32 = arith.constant 0 : i32
    %c0_i32_0 = arith.constant 0 : i32
    %c0_i32_1 = arith.constant 0 : i32
    return %c0_i32, %c0_i32_0 : i32, i32
  }
  func.func @transform_5(%arg0: i32) -> (i32, i32) {
    %c0_i32 = arith.constant 0 : i32
    %c0_i32_0 = arith.constant 0 : i32
    %c0_i32_1 = arith.constant 0 : i32
    return %c0_i32, %c0_i32_0 : i32, i32
  }
  func.func @transform_6(%arg0: i32) -> (i32, i32, i32) {
    %c0_i32 = arith.constant 0 : i32
    %c0_i32_0 = arith.constant 0 : i32
    %c0_i32_1 = arith.constant 0 : i32
    %c0_i32_2 = arith.constant 0 : i32
    return %c0_i32, %c0_i32_0, %c0_i32_1 : i32, i32, i32
  }
  func.func @transform_7(%arg0: i32) -> (i32, i32) {
    %c0_i32 = arith.constant 0 : i32
    %c0_i32_0 = arith.constant 0 : i32
    %c0_i32_1 = arith.constant 0 : i32
    return %c0_i32, %c0_i32_0 : i32, i32
  }
  func.func @transform_8(%arg0: i32) -> (i32, i32) {
    %c0_i32 = arith.constant 0 : i32
    %c0_i32_0 = arith.constant 0 : i32
    %c0_i32_1 = arith.constant 0 : i32
    return %c0_i32, %c0_i32_0 : i32, i32
  }
  func.func @transform_9(%arg0: i32) -> (i32, i32) {
    %c0_i32 = arith.constant 0 : i32
    %c0_i32_0 = arith.constant 0 : i32
    %c0_i32_1 = arith.constant 0 : i32
    return %c0_i32, %c0_i32_0 : i32, i32
  }
  func.func @transform_10(%arg0: i32) -> (i32, i32) {
    %c0_i32 = arith.constant 0 : i32
    %c0_i32_0 = arith.constant 0 : i32
    %c0_i32_1 = arith.constant 0 : i32
    return %c0_i32, %c0_i32_0 : i32, i32
  }
  func.func @transform_11(%arg0: i32) -> (i32, i32) {
    %c0_i32 = arith.constant 0 : i32
    %c0_i32_0 = arith.constant 0 : i32
    return %arg0, %c0_i32 : i32, i32
  }
}

</mosaic_0001>

<llo_original>
// kernel: tpu_custom_call.1
$region0: #{tpu_custom_call.1}
  #allocation0 [shape = 'u32[]', space=smem, size = 0x4, offset = 0x4, fixed_abs, tag = 'smem constant byte address 0x4 - core index']
  #allocation1 [shape = 'u32[72,128]{1,0:T(1,128)}', space=vmem, size = 0x9000, scoped, tag = 'internal scratch']
  %s0 = inlined_call_operand.vmem [shape: f32[8,16], index: 0, kind: input, shape index: {}]
  %s1 = inlined_call_operand.vmem [shape: f32[16,64], index: 1, kind: input, shape index: {}]
  %s2 = inlined_call_operand.vmem [shape: f32[1,64], index: 2, kind: input, shape index: {}]
  %s3 = inlined_call_operand.vmem [shape: f32[4,64,16], index: 3, kind: input, shape index: {}]
  %s4 = inlined_call_operand.vmem [shape: f32[16,32], index: 4, kind: input, shape index: {}]
  %s5 = inlined_call_operand.vmem [shape: f32[1,32], index: 5, kind: input, shape index: {}]
  %s6 = inlined_call_operand.vmem [shape: f32[4,32,8], index: 6, kind: input, shape index: {}]
  %s7 = inlined_call_operand.vmem [shape: f32[8,20], index: 7, kind: input, shape index: {}]
  %s8 = inlined_call_operand.vmem [shape: f32[1,20], index: 8, kind: input, shape index: {}]
  %s9 = inlined_call_operand.vmem [shape: f32[20,128], index: 9, kind: input, shape index: {}]
  %s10 = inlined_call_operand.vmem [shape: f32[1,128], index: 10, kind: input, shape index: {}]
  %s11 = inlined_call_operand.hbm [shape: f32[8,128], index: 11, kind: output, shape index: {}]
  %s12 = sld [smem:[#allocation0]]
  $region54: #{tpu_custom_call.1} parent=0
    _
  %s14 = ssub.s32 1, %s12
  %s15 = scalar_select 0, %s14, %s12
  $region1: #{tpu_custom_call.1} parent=0
    #allocation2 [shape = 'u8[4096]{0}', space=vmem, size = 0x1000, scoped, tag = 'output window, operand 0, single buffered']
    #allocation3 [shape = 's32[1]{0}', space=sflag, size = 0x4, scoped, tag = 'scoped memory for tpu_custom_call.1']
    %16 = vsyncpa [#allocation3], 0
    // Predicated region
    $region2: #{tpu_custom_call.1} parent=1 // pred_check
      _
    $region3: #{tpu_custom_call.1} parent=1 // pred_check_branch
      %18 = sbr.rel (0) target = $region5
    $region4: #{tpu_custom_call.1} parent=1 // pred_region
      _
    $region5: #{tpu_custom_call.1} parent=1 // pred_fallthru
      _
    // Predicated region
    $region6: #{tpu_custom_call.1} parent=1 // pred_check
      _
    $region7: #{tpu_custom_call.1} parent=1 // pred_check_branch
      %20 = sbr.rel (0) target = $region9
    $region8: #{tpu_custom_call.1} parent=1 // pred_region
      _
    $region9: #{tpu_custom_call.1} parent=1 // pred_fallthru
      _
    // Predicated region
    $region10: #{tpu_custom_call.1} parent=1 // pred_check
      _
    $region11: #{tpu_custom_call.1} parent=1 // pred_check_branch
      %22 = sbr.rel (0) target = $region13
    $region12: #{tpu_custom_call.1} parent=1 // pred_region
      _
    $region13: #{tpu_custom_call.1} parent=1 // pred_fallthru
      _
    // Predicated region
    $region14: #{tpu_custom_call.1} parent=1 // pred_check
      _
    $region15: #{tpu_custom_call.1} parent=1 // pred_check_branch
      %24 = sbr.rel (0) target = $region17
    $region16: #{tpu_custom_call.1} parent=1 // pred_region
      _
    $region17: #{tpu_custom_call.1} parent=1 // pred_fallthru
      _
    // Predicated region
    $region18: #{tpu_custom_call.1} parent=1 // pred_check
      _
    $region19: #{tpu_custom_call.1} parent=1 // pred_check_branch
      %26 = sbr.rel (0) target = $region21
    $region20: #{tpu_custom_call.1} parent=1 // pred_region
      _
    $region21: #{tpu_custom_call.1} parent=1 // pred_fallthru
      _
    // Predicated region
    $region22: #{tpu_custom_call.1} parent=1 // pred_check
      _
    $region23: #{tpu_custom_call.1} parent=1 // pred_check_branch
      %28 = sbr.rel (0) target = $region25
    $region24: #{tpu_custom_call.1} parent=1 // pred_region
      _
    $region25: #{tpu_custom_call.1} parent=1 // pred_fallthru
      _
    // Predicated region
    $region26: #{tpu_custom_call.1} parent=1 // pred_check
      _
    $region27: #{tpu_custom_call.1} parent=1 // pred_check_branch
      %30 = sbr.rel (0) target = $region29
    $region28: #{tpu_custom_call.1} parent=1 // pred_region
      _
    $region29: #{tpu_custom_call.1} parent=1 // pred_fallthru
      _
    // Predicated region
    $region30: #{tpu_custom_call.1} parent=1 // pred_check
      _
    $region31: #{tpu_custom_call.1} parent=1 // pred_check_branch
      %32 = sbr.rel (0) target = $region33
    $region32: #{tpu_custom_call.1} parent=1 // pred_region
      _
    $region33: #{tpu_custom_call.1} parent=1 // pred_fallthru
      _
    // Predicated region
    $region34: #{tpu_custom_call.1} parent=1 // pred_check
      _
    $region35: #{tpu_custom_call.1} parent=1 // pred_check_branch
      %34 = sbr.rel (0) target = $region37
    $region36: #{tpu_custom_call.1} parent=1 // pred_region
      _
    $region37: #{tpu_custom_call.1} parent=1 // pred_fallthru
      _
    // Predicated region
    $region38: #{tpu_custom_call.1} parent=1 // pred_check
      _
    $region39: #{tpu_custom_call.1} parent=1 // pred_check_branch
      %36 = sbr.rel (0) target = $region41
    $region40: #{tpu_custom_call.1} parent=1 // pred_region
      _
    $region41: #{tpu_custom_call.1} parent=1 // pred_fallthru
      _
    // Predicated region
    $region42: #{tpu_custom_call.1} parent=1 // pred_check
      _
    $region43: #{tpu_custom_call.1} parent=1 // pred_check_branch
      %38 = sbr.rel (0) target = $region45
    $region44: #{tpu_custom_call.1} parent=1 // pred_region
      _
    $region45: #{tpu_custom_call.1} parent=1 // pred_fallthru
      _
    %v39 = vld [vmem:[%s0] sm:$0xff]
    %v40 = vld [vmem:[%s1] sm:$0xff]
    %v41 = vld [vmem:[%s1 + $0x8] sm:$0xff]
    %v42 = vld [vmem:[%s2] sm:$0x1]
    %v44 = vperm.slane %v42, 0
    %vm46 = vcmask 130048
    %v48 = vsel %vm46, %v39, 0
    %50 = vmatpush.msra.mxu0 0.0
    %51 = vmatpush.msra.mxu0 0.0
    %52 = vmatpush.msra.mxu0 0.0
    %53 = vmatpush.msra.mxu0 0.0
    %54 = vmatpush.msra.mxu0 0.0
    %55 = vmatpush.msra.mxu0 0.0
    %56 = vmatpush.msra.mxu0 0.0
    %57 = vmatpush.msra.mxu0 0.0
    %58 = vmatpush.msra.mxu0 0.0
    %59 = vmatpush.msra.mxu0 0.0
    %60 = vmatpush.msra.mxu0 0.0
    %61 = vmatpush.msra.mxu0 0.0
    %62 = vmatpush.msra.mxu0 0.0
    %63 = vmatpush.msra.mxu0 0.0
    %64 = vmatpush.msra.mxu0 %v41
    %65 = vmatpush.msra.mxu0 %v40
    %66 = vmatmul.f32.gmra.mxu0 %v48
    %v67 = vpop.f32.mrf.mxu0
    %v68 = vadd.f32 %v44, %v67
    %69 = vdwg.mxu0
    %v70 = vmax.f32 %v68, 0.0
    %v71 = vld [vmem:[%s3] sm:$0xff]
    %v72 = vld [vmem:[%s3 + $0x8] sm:$0xff]
    %v73 = vld [vmem:[%s3 + $0x10] sm:$0xff]
    %v74 = vld [vmem:[%s3 + $0x18] sm:$0xff]
    %v75 = vld [vmem:[%s3 + $0x20] sm:$0xff]
    %v76 = vld [vmem:[%s3 + $0x28] sm:$0xff]
    %v77 = vld [vmem:[%s3 + $0x30] sm:$0xff]
    %v78 = vld [vmem:[%s3 + $0x38] sm:$0xff]
    %vm79 = vcmask 523264
    %v81 = vsel %vm79, %v70, 0
    %83 = vmatpush.msra.mxu0 0.0
    %84 = vmatpush.msra.mxu0 0.0
    %85 = vmatpush.msra.mxu0 0.0
    %86 = vmatpush.msra.mxu0 0.0
    %87 = vmatpush.msra.mxu0 0.0
    %88 = vmatpush.msra.mxu0 0.0
    %89 = vmatpush.msra.mxu0 0.0
    %90 = vmatpush.msra.mxu0 0.0
    %91 = vmatpush.msra.mxu0 %v78
    %92 = vmatpush.msra.mxu0 %v77
    %93 = vmatpush.msra.mxu0 %v76
    %94 = vmatpush.msra.mxu0 %v75
    %95 = vmatpush.msra.mxu0 %v74
    %96 = vmatpush.msra.mxu0 %v73
    %97 = vmatpush.msra.mxu0 %v72
    %98 = vmatpush.msra.mxu0 %v71
    %99 = vmatmul.f32.gmra.mxu0 %v81
    %v100 = vpop.f32.mrf.mxu0
    %v101 = vadd.f32 0.0, %v100
    %102 = vdwg.mxu0
    %s103 = scalar_lea.vmem %s3, 64
    %v104 = vld [vmem:[%s103] sm:$0xff]
    %v105 = vld [vmem:[%s103 + $0x8] sm:$0xff]
    %v106 = vld [vmem:[%s103 + $0x10] sm:$0xff]
    %v107 = vld [vmem:[%s103 + $0x18] sm:$0xff]
    %v108 = vld [vmem:[%s103 + $0x20] sm:$0xff]
    %v109 = vld [vmem:[%s103 + $0x28] sm:$0xff]
    %v110 = vld [vmem:[%s103 + $0x30] sm:$0xff]
    %v111 = vld [vmem:[%s103 + $0x38] sm:$0xff]
    %112 = vmatpush.msra.mxu0 0.0
    %113 = vmatpush.msra.mxu0 0.0
    %114 = vmatpush.msra.mxu0 0.0
    %115 = vmatpush.msra.mxu0 0.0
    %116 = vmatpush.msra.mxu0 0.0
    %117 = vmatpush.msra.mxu0 0.0
    %118 = vmatpush.msra.mxu0 0.0
    %119 = vmatpush.msra.mxu0 0.0
    %120 = vmatpush.msra.mxu0 %v111
    %121 = vmatpush.msra.mxu0 %v110
    %122 = vmatpush.msra.mxu0 %v109
    %123 = vmatpush.msra.mxu0 %v108
    %124 = vmatpush.msra.mxu0 %v107
    %125 = vmatpush.msra.mxu0 %v106
    %126 = vmatpush.msra.mxu0 %v105
    %127 = vmatpush.msra.mxu0 %v104
    %128 = vmatmul.f32.gmra.mxu0 %v81
    %v129 = vpop.f32.mrf.mxu0
    %v130 = vadd.f32 0.0, %v129
    %131 = vdwg.mxu0
    %v132 = vmax.f32 %v101, %v130
    %s133 = scalar_lea.vmem %s3, 128
    %v134 = vld [vmem:[%s133] sm:$0xff]
    %v135 = vld [vmem:[%s133 + $0x8] sm:$0xff]
    %v136 = vld [vmem:[%s133 + $0x10] sm:$0xff]
    %v137 = vld [vmem:[%s133 + $0x18] sm:$0xff]
    %v138 = vld [vmem:[%s133 + $0x20] sm:$0xff]
    %v139 = vld [vmem:[%s133 + $0x28] sm:$0xff]
    %v140 = vld [vmem:[%s133 + $0x30] sm:$0xff]
    %v141 = vld [vmem:[%s133 + $0x38] sm:$0xff]
    %142 = vmatpush.msra.mxu0 0.0
    %143 = vmatpush.msra.mxu0 0.0
    %144 = vmatpush.msra.mxu0 0.0
    %145 = vmatpush.msra.mxu0 0.0
    %146 = vmatpush.msra.mxu0 0.0
    %147 = vmatpush.msra.mxu0 0.0
    %148 = vmatpush.msra.mxu0 0.0
    %149 = vmatpush.msra.mxu0 0.0
    %150 = vmatpush.msra.mxu0 %v141
    %151 = vmatpush.msra.mxu0 %v140
    %152 = vmatpush.msra.mxu0 %v139
    %153 = vmatpush.msra.mxu0 %v138
    %154 = vmatpush.msra.mxu0 %v137
    %155 = vmatpush.msra.mxu0 %v136
    %156 = vmatpush.msra.mxu0 %v135
    %157 = vmatpush.msra.mxu0 %v134
    %158 = vmatmul.f32.gmra.mxu0 %v81
    %v159 = vpop.f32.mrf.mxu0
    %v160 = vadd.f32 0.0, %v159
    %161 = vdwg.mxu0
    %v162 = vmax.f32 %v132, %v160
    %s163 = scalar_lea.vmem %s3, 192
    %v164 = vld [vmem:[%s163] sm:$0xff]
    %v165 = vld [vmem:[%s163 + $0x8] sm:$0xff]
    %v166 = vld [vmem:[%s163 + $0x10] sm:$0xff]
    %v167 = vld [vmem:[%s163 + $0x18] sm:$0xff]
    %v168 = vld [vmem:[%s163 + $0x20] sm:$0xff]
    %v169 = vld [vmem:[%s163 + $0x28] sm:$0xff]
    %v170 = vld [vmem:[%s163 + $0x30] sm:$0xff]
    %v171 = vld [vmem:[%s163 + $0x38] sm:$0xff]
    %172 = vmatpush.msra.mxu0 0.0
    %173 = vmatpush.msra.mxu0 0.0
    %174 = vmatpush.msra.mxu0 0.0
    %175 = vmatpush.msra.mxu0 0.0
    %176 = vmatpush.msra.mxu0 0.0
    %177 = vmatpush.msra.mxu0 0.0
    %178 = vmatpush.msra.mxu0 0.0
    %179 = vmatpush.msra.mxu0 0.0
    %180 = vmatpush.msra.mxu0 %v171
    %181 = vmatpush.msra.mxu0 %v170
    %182 = vmatpush.msra.mxu0 %v169
    %183 = vmatpush.msra.mxu0 %v168
    %184 = vmatpush.msra.mxu0 %v167
    %185 = vmatpush.msra.mxu0 %v166
    %186 = vmatpush.msra.mxu0 %v165
    %187 = vmatpush.msra.mxu0 %v164
    %188 = vmatmul.f32.gmra.mxu0 %v81
    %v189 = vpop.f32.mrf.mxu0
    %v190 = vadd.f32 0.0, %v189
    %191 = vdwg.mxu0
    %v192 = vmax.f32 %v162, %v190
    %v193 = vld [vmem:[%s4] sm:$0xff]
    %v194 = vld [vmem:[%s4 + $0x8] sm:$0xff]
    %v195 = vld [vmem:[%s5] sm:$0x1]
    %v197 = vperm.slane %v195, 0
    %v200 = vsel %vm46, %v192, 0
    %202 = vmatpush.msra.mxu0 0.0
    %203 = vmatpush.msra.mxu0 0.0
    %204 = vmatpush.msra.mxu0 0.0
    %205 = vmatpush.msra.mxu0 0.0
    %206 = vmatpush.msra.mxu0 0.0
    %207 = vmatpush.msra.mxu0 0.0
    %208 = vmatpush.msra.mxu0 0.0
    %209 = vmatpush.msra.mxu0 0.0
    %210 = vmatpush.msra.mxu0 0.0
    %211 = vmatpush.msra.mxu0 0.0
    %212 = vmatpush.msra.mxu0 0.0
    %213 = vmatpush.msra.mxu0 0.0
    %214 = vmatpush.msra.mxu0 0.0
    %215 = vmatpush.msra.mxu0 0.0
    %216 = vmatpush.msra.mxu0 %v194
    %217 = vmatpush.msra.mxu0 %v193
    %218 = vmatmul.f32.gmra.mxu0 %v200
    %v219 = vpop.f32.mrf.mxu0
    %v220 = vadd.f32 %v197, %v219
    %221 = vdwg.mxu0
    %v222 = vmax.f32 %v220, 0.0
    %v223 = vld [vmem:[%s6] sm:$0xff]
    %v224 = vld [vmem:[%s6 + $0x8] sm:$0xff]
    %v225 = vld [vmem:[%s6 + $0x10] sm:$0xff]
    %v226 = vld [vmem:[%s6 + $0x18] sm:$0xff]
    %vm227 = vcmask 261120
    %v229 = vsel %vm227, %v222, 0
    %231 = vmatpush.msra.mxu0 0.0
    %232 = vmatpush.msra.mxu0 0.0
    %233 = vmatpush.msra.mxu0 0.0
    %234 = vmatpush.msra.mxu0 0.0
    %235 = vmatpush.msra.mxu0 0.0
    %236 = vmatpush.msra.mxu0 0.0
    %237 = vmatpush.msra.mxu0 0.0
    %238 = vmatpush.msra.mxu0 0.0
    %239 = vmatpush.msra.mxu0 0.0
    %240 = vmatpush.msra.mxu0 0.0
    %241 = vmatpush.msra.mxu0 0.0
    %242 = vmatpush.msra.mxu0 0.0
    %243 = vmatpush.msra.mxu0 %v226
    %244 = vmatpush.msra.mxu0 %v225
    %245 = vmatpush.msra.mxu0 %v224
    %246 = vmatpush.msra.mxu0 %v223
    %247 = vmatmul.f32.gmra.mxu0 %v229
    %v248 = vpop.f32.mrf.mxu0
    %v249 = vadd.f32 0.0, %v248
    %250 = vdwg.mxu0
    %s251 = scalar_lea.vmem %s6, 32
    %v252 = vld [vmem:[%s251] sm:$0xff]
    %v253 = vld [vmem:[%s251 + $0x8] sm:$0xff]
    %v254 = vld [vmem:[%s251 + $0x10] sm:$0xff]
    %v255 = vld [vmem:[%s251 + $0x18] sm:$0xff]
    %256 = vmatpush.msra.mxu0 0.0
    %257 = vmatpush.msra.mxu0 0.0
    %258 = vmatpush.msra.mxu0 0.0
    %259 = vmatpush.msra.mxu0 0.0
    %260 = vmatpush.msra.mxu0 0.0
    %261 = vmatpush.msra.mxu0 0.0
    %262 = vmatpush.msra.mxu0 0.0
    %263 = vmatpush.msra.mxu0 0.0
    %264 = vmatpush.msra.mxu0 0.0
    %265 = vmatpush.msra.mxu0 0.0
    %266 = vmatpush.msra.mxu0 0.0
    %267 = vmatpush.msra.mxu0 0.0
    %268 = vmatpush.msra.mxu0 %v255
    %269 = vmatpush.msra.mxu0 %v254
    %270 = vmatpush.msra.mxu0 %v253
    %271 = vmatpush.msra.mxu0 %v252
    %272 = vmatmul.f32.gmra.mxu0 %v229
    %v273 = vpop.f32.mrf.mxu0
    %v274 = vadd.f32 0.0, %v273
    %275 = vdwg.mxu0
    %v276 = vmax.f32 %v249, %v274
    %s277 = scalar_lea.vmem %s6, 64
    %v278 = vld [vmem:[%s277] sm:$0xff]
    %v279 = vld [vmem:[%s277 + $0x8] sm:$0xff]
    %v280 = vld [vmem:[%s277 + $0x10] sm:$0xff]
    %v281 = vld [vmem:[%s277 + $0x18] sm:$0xff]
    %282 = vmatpush.msra.mxu0 0.0
    %283 = vmatpush.msra.mxu0 0.0
    %284 = vmatpush.msra.mxu0 0.0
    %285 = vmatpush.msra.mxu0 0.0
    %286 = vmatpush.msra.mxu0 0.0
    %287 = vmatpush.msra.mxu0 0.0
    %288 = vmatpush.msra.mxu0 0.0
    %289 = vmatpush.msra.mxu0 0.0
    %290 = vmatpush.msra.mxu0 0.0
    %291 = vmatpush.msra.mxu0 0.0
    %292 = vmatpush.msra.mxu0 0.0
    %293 = vmatpush.msra.mxu0 0.0
    %294 = vmatpush.msra.mxu0 %v281
    %295 = vmatpush.msra.mxu0 %v280
    %296 = vmatpush.msra.mxu0 %v279
    %297 = vmatpush.msra.mxu0 %v278
    %298 = vmatmul.f32.gmra.mxu0 %v229
    %v299 = vpop.f32.mrf.mxu0
    %v300 = vadd.f32 0.0, %v299
    %301 = vdwg.mxu0
    %v302 = vmax.f32 %v276, %v300
    %s303 = scalar_lea.vmem %s6, 96
    %v304 = vld [vmem:[%s303] sm:$0xff]
    %v305 = vld [vmem:[%s303 + $0x8] sm:$0xff]
    %v306 = vld [vmem:[%s303 + $0x10] sm:$0xff]
    %v307 = vld [vmem:[%s303 + $0x18] sm:$0xff]
    %308 = vmatpush.msra.mxu0 0.0
    %309 = vmatpush.msra.mxu0 0.0
    %310 = vmatpush.msra.mxu0 0.0
    %311 = vmatpush.msra.mxu0 0.0
    %312 = vmatpush.msra.mxu0 0.0
    %313 = vmatpush.msra.mxu0 0.0
    %314 = vmatpush.msra.mxu0 0.0
    %315 = vmatpush.msra.mxu0 0.0
    %316 = vmatpush.msra.mxu0 0.0
    %317 = vmatpush.msra.mxu0 0.0
    %318 = vmatpush.msra.mxu0 0.0
    %319 = vmatpush.msra.mxu0 0.0
    %320 = vmatpush.msra.mxu0 %v307
    %321 = vmatpush.msra.mxu0 %v306
    %322 = vmatpush.msra.mxu0 %v305
    %323 = vmatpush.msra.mxu0 %v304
    %324 = vmatmul.f32.gmra.mxu0 %v229
    %v325 = vpop.f32.mrf.mxu0
    %v326 = vadd.f32 0.0, %v325
    %327 = vdwg.mxu0
    %v328 = vmax.f32 %v302, %v326
    %v329 = vld [vmem:[%s7] sm:$0xff]
    %v330 = vld [vmem:[%s8] sm:$0x1]
    %v332 = vperm.slane %v330, 0
    %vm334 = vcmask 64512
    %v336 = vsel %vm334, %v328, 0
    %338 = vmatpush.msra.mxu0 0.0
    %339 = vmatpush.msra.mxu0 0.0
    %340 = vmatpush.msra.mxu0 0.0
    %341 = vmatpush.msra.mxu0 0.0
    %342 = vmatpush.msra.mxu0 0.0
    %343 = vmatpush.msra.mxu0 0.0
    %344 = vmatpush.msra.mxu0 0.0
    %345 = vmatpush.msra.mxu0 0.0
    %346 = vmatpush.msra.mxu0 0.0
    %347 = vmatpush.msra.mxu0 0.0
    %348 = vmatpush.msra.mxu0 0.0
    %349 = vmatpush.msra.mxu0 0.0
    %350 = vmatpush.msra.mxu0 0.0
    %351 = vmatpush.msra.mxu0 0.0
    %352 = vmatpush.msra.mxu0 0.0
    %353 = vmatpush.msra.mxu0 %v329
    %354 = vmatmul.f32.gmra.mxu0 %v336
    %v355 = vpop.f32.mrf.mxu0
    %v356 = vadd.f32 %v332, %v355
    %357 = vdwg.mxu0
    %v358 = vmax.f32 %v356, 0.0
    %v359 = vld [vmem:[%s9] sm:$0xff]
    %v360 = vld [vmem:[%s9 + $0x8] sm:$0xff]
    %v361 = vld [vmem:[%s9 + $0x10] sm:$0xf]
    %v362 = vld [vmem:[%s10] sm:$0x1]
    %v364 = vperm.slane %v362, 0
    %vm366 = vcmask 162816
    %v368 = vsel %vm366, %v358, 0
    %vm370 = vcmask 1043456
    %v372 = vsel %vm370, %v361, 0
    %374 = vmatpush.msra.mxu0 0.0
    %375 = vmatpush.msra.mxu0 0.0
    %376 = vmatpush.msra.mxu0 0.0
    %377 = vmatpush.msra.mxu0 0.0
    %378 = vmatpush.msra.mxu0 0.0
    %379 = vmatpush.msra.mxu0 0.0
    %380 = vmatpush.msra.mxu0 0.0
    %381 = vmatpush.msra.mxu0 0.0
    %382 = vmatpush.msra.mxu0 0.0
    %383 = vmatpush.msra.mxu0 0.0
    %384 = vmatpush.msra.mxu0 0.0
    %385 = vmatpush.msra.mxu0 0.0
    %386 = vmatpush.msra.mxu0 0.0
    %387 = vmatpush.msra.mxu0 %v372
    %388 = vmatpush.msra.mxu0 %v360
    %389 = vmatpush.msra.mxu0 %v359
    %390 = vmatmul.f32.gmra.mxu0 %v368
    %v391 = vpop.f32.mrf.mxu0
    %v392 = vadd.f32 %v364, %v391
    %393 = vdwg.mxu0
    %394 = vst [vmem:[#allocation2] sm:$0xff] %v392
    // Predicated region
    $region46: #{tpu_custom_call.1} parent=1 // pred_check
      _
    $region47: #{tpu_custom_call.1} parent=1 // pred_check_branch
      %396 = sbr.rel (0) target = $region49
    $region48: #{tpu_custom_call.1} parent=1 // pred_region
      %398 = vsyncadd [#allocation3], 0
      %s400 = sshll.u32 [#allocation2], 4
      %s401 = int_to_ptr.vmem [resolvable:$true] %s400
      %s402 = sshll.u32 %s11, 4
      %s403 = int_to_ptr.hbm [resolvable:$true] %s402
      %405 = dma.vmem_to_hbm [thread:$0]  %s401, 128, %s403, [#allocation3]
    $region49: #{tpu_custom_call.1} parent=1 // pred_fallthru
      _
    // Predicated region
    $region50: #{tpu_custom_call.1} parent=1 // pred_check
      _
    $region51: #{tpu_custom_call.1} parent=1 // pred_check_branch
      %407 = sbr.rel (0) target = $region53
    $region52: #{tpu_custom_call.1} parent=1 // pred_region
      %409 = dma.done [#allocation3], 128
    $region53: #{tpu_custom_call.1} parent=1 // pred_fallthru
      _
    %410 = vsyncpa [#allocation3], 1

</llo_original>
